<compile_context>
chip_gen: v6e
topology: v6e:2x2x1
jax: 0.10.0
libtpu: 0.0.40
codegen_flags: <defaults>
</compile_context>

<pallas_src>
import jax
import jax.numpy as jnp
from jax.experimental import pallas as pl
from jax.experimental.pallas import tpu as pltpu


def rnn_linear_kernel(emb_ref, wih_ref, whh_ref, b_ref, wlin_ref, blin_ref,
                      out_ref, h_ref):
    """One (B-block, S-chunk) grid step of the Elman RNN + final Linear.

    emb_ref : (S_c, B_blk, E)  embedded tokens for this chunk, seq-major (E padded to 128)
    wih_ref : (E, H)           input->hidden weights (transposed vs PyTorch, padded)
    whh_ref : (H, H)           hidden->hidden weights (transposed vs PyTorch)
    b_ref   : (1, H)  f32      b_ih + b_hh
    wlin_ref: (1, H)  f32      linear weights as a row vector
    blin_ref: (1,)    f32      linear bias (SMEM scalar)
    out_ref : (B_blk, 1) f32   logits (written on the last S-chunk only)
    h_ref   : (B_blk, H) f32   VMEM scratch: hidden state carried across S-chunks
    """
    si = pl.program_id(1)

    @pl.when(si == 0)
    def _():
        h_ref[...] = jnp.zeros_like(h_ref)

    S_c, B_blk, E = emb_ref.shape
    H = whh_ref.shape[1]

    # Input projection for the whole chunk: ONE well-shaped (S_c*B, E) @ (E, H) MXU
    # matmul with the bias folded in once; kept as a traced value (no scratch round-trip).
    x_all = emb_ref[...].reshape(S_c * B_blk, E)
    pre = (jnp.dot(x_all, wih_ref[...], preferred_element_type=jnp.float32)
           + b_ref[...]).reshape(S_c, B_blk, H)

    whh = whh_ref[...]        # resident in vregs across the chunk
    h = h_ref[...]            # f32 carry

    # Statically unrolled recurrence (S_c is a small, static chunk size), so the LLO
    # scheduler sees all steps; pre[t] is a static slice of a traced value.
    for t in range(S_c):
        h = jnp.tanh(
            jnp.dot(h.astype(whh.dtype), whh, preferred_element_type=jnp.float32)
            + pre[t])
    h_ref[...] = h

    @pl.when(si == pl.num_programs(1) - 1)
    def _():
        # Final Linear(H, 1) as a VPU mul + XLU lane reduction.
        out_ref[...] = (jnp.sum(h * wlin_ref[...], axis=-1, keepdims=True)
                        + blin_ref[0])


def nlp_movie_rnn_forward(X, params, *, s_chunk=None, compute_dtype=jnp.float32):
    """X: (B, S) int32 token ids.  Returns (B, 1) float32 logits (pre-sigmoid)."""
    emb_table_p = params["emb_table_pad"]      # (V, E_pad)  pre-padded at init
    w_ih_p = params["w_ih_pad"]                # (E_pad, H)  pre-padded at init
    w_hh = params["w_hh"]                      # (H, H)
    b = params["b"]                            # (1, H)
    w_lin_row = params["w_lin_row"]            # (1, H)
    b_lin_s = params["b_lin_s"]                # (1,)

    B, S = X.shape
    E_pad, H = w_ih_p.shape

    # Pad B to a sublane multiple; cap B blocks at the MXU height (128).
    if B <= 128:
        B_pad = max(8, ((B + 7) // 8) * 8)
        b_blk = B_pad
    else:
        B_pad = ((B + 127) // 128) * 128
        b_blk = 128

    # S chunking (trailing "arbitrary" grid axis). Must divide S exactly.
    if s_chunk is None:
        s_chunk = next((c for c in (16, 8, 4, 2, 1) if S % c == 0), 1)
    assert S % s_chunk == 0, "s_chunk must divide S"

    # Seq-major gather straight from the pre-padded table: no activation-sized
    # pad or transpose passes in the wrapper.  Pad the tiny int X instead.
    X_p = jnp.pad(X, ((0, B_pad - B), (0, 0)))                 # (B_pad, S)
    emb = jnp.take(emb_table_p, X_p.T, axis=0)                 # (S, B_pad, E_pad)
    emb = emb.astype(compute_dtype)

    grid = (B_pad // b_blk, S // s_chunk)

    out = pl.pallas_call(
        rnn_linear_kernel,
        out_shape=jax.ShapeDtypeStruct((B_pad, 1), jnp.float32),
        grid_spec=pltpu.PrefetchScalarGridSpec(
            num_scalar_prefetch=0,
            grid=grid,
            in_specs=[
                pl.BlockSpec((s_chunk, b_blk, E_pad), lambda bi, si: (si, bi, 0)),
                pl.BlockSpec((E_pad, H), lambda bi, si: (0, 0)),
                pl.BlockSpec((H, H), lambda bi, si: (0, 0)),
                pl.BlockSpec((1, H), lambda bi, si: (0, 0)),
                pl.BlockSpec((1, H), lambda bi, si: (0, 0)),
                pl.BlockSpec(memory_space=pltpu.MemorySpace.SMEM),
            ],
            out_specs=pl.BlockSpec((b_blk, 1), lambda bi, si: (bi, 0)),
            scratch_shapes=[pltpu.VMEM((b_blk, H), jnp.float32)],
        ),
        compiler_params=pltpu.CompilerParams(
            dimension_semantics=("parallel", "arbitrary")),
    )(emb,
      w_ih_p.astype(compute_dtype),
      w_hh.astype(compute_dtype),
      b.astype(jnp.float32),
      w_lin_row.astype(jnp.float32),
      b_lin_s.astype(jnp.float32))
    return out[:B]


def init_params(key, vocab_size=500, emb_dim=100, hidden=128):
    """Deterministic synthetic parameters matching the PyTorch module's shapes."""
    k = jax.random.split(key, 6)
    bound = 1.0 / jnp.sqrt(hidden)
    emb_table = jax.random.normal(k[0], (vocab_size, emb_dim), jnp.float32)
    # PyTorch stores W_ih (H, E) / W_hh (H, H); we keep transposed copies so the
    # kernel computes x @ W_ih^T as x @ w_ih.  (A real nn.RNN/nn.Linear state_dict
    # would need explicit transposes before feeding this kernel.)
    w_ih = jax.random.uniform(k[1], (emb_dim, hidden), jnp.float32, -bound, bound)
    w_hh = jax.random.uniform(k[2], (hidden, hidden), jnp.float32, -bound, bound)
    b_ih = jax.random.uniform(k[3], (hidden,), jnp.float32, -bound, bound)
    b_hh = jax.random.uniform(k[4], (hidden,), jnp.float32, -bound, bound)
    w_lin = jax.random.uniform(k[5], (hidden, 1), jnp.float32, -bound, bound)
    b_lin = jnp.zeros((1, 1), jnp.float32)

    e_pad = ((emb_dim + 127) // 128) * 128    # 100 -> 128 (lane-dense)
    return {
        "emb_table": emb_table,
        "w_ih": w_ih,
        "w_hh": w_hh,
        "b": (b_ih + b_hh).reshape(1, hidden),
        "w_lin": w_lin,
        "b_lin": b_lin,
        # Pre-padded copies so the per-call wrapper does no activation-sized padding.
        "emb_table_pad": jnp.pad(emb_table, ((0, 0), (0, e_pad - emb_dim))),
        "w_ih_pad": jnp.pad(w_ih, ((0, e_pad - emb_dim), (0, 0))),
        "w_lin_row": w_lin.T,                  # (1, H)
        "b_lin_s": b_lin.reshape(1),           # (1,)
    }


def _reference(X, params):
    """Pure-JAX reference for a sanity check (unpadded E=100 math, fp32)."""
    emb = jnp.take(params["emb_table"], X, axis=0).astype(jnp.float32)  # (B,S,E)
    B, S, E = emb.shape
    H = params["w_hh"].shape[0]
    h = jnp.zeros((B, H), jnp.float32)
    for t in range(S):
        h = jnp.tanh(emb[:, t, :] @ params["w_ih"] + h @ params["w_hh"]
                     + params["b"])
    return h @ params["w_lin"] + params["b_lin"]


if __name__ == "__main__":
    key = jax.random.PRNGKey(0)
    pkey, xkey = jax.random.split(key)

    vocab_size, emb_dim, hidden = 500, 100, 128
    batch, seq = 2, 8

    params = init_params(pkey, vocab_size, emb_dim, hidden)
    X = jax.random.randint(xkey, (batch, seq), 0, vocab_size, dtype=jnp.int32)

    # fp32 path (exact PyTorch semantics); s_chunk=4 exercises the carried-h grid.
    fwd = jax.jit(lambda x: nlp_movie_rnn_forward(x, params, s_chunk=4))
    y = jax.block_until_ready(fwd(X))

    y_ref = _reference(X, params)
    assert y.shape == (batch, 1)
    assert jnp.allclose(y, y_ref, atol=1e-3, rtol=1e-4)

    # Opt-in bf16 MXU path (f32 accumulation); numerics differ from fp32 PyTorch
    # across the recurrence, so validated with a loose tolerance only.
    fwd_bf16 = jax.jit(lambda x: nlp_movie_rnn_forward(
        x, params, s_chunk=4, compute_dtype=jnp.bfloat16))
    y_bf16 = jax.block_until_ready(fwd_bf16(X))
    assert y_bf16.shape == (batch, 1)
    assert jnp.allclose(y_bf16, y_ref, atol=1e-1, rtol=1e-1)

    # TODO(synk): sigmoid_layer exists in __init__ but is not applied in forward(),
    # so it is intentionally omitted here.
    print("KERNEL_OK")
</pallas_src>

<mosaic_0001>
module attributes {stable_mosaic.version = 11 : i64} {
  func.func @rnn_linear_kernel(%arg0: i32, %arg1: i32, %arg2: memref<4x8x128xf32, #tpu.memory_space<vmem>>, %arg3: memref<128x128xf32, #tpu.memory_space<vmem>>, %arg4: memref<128x128xf32, #tpu.memory_space<vmem>>, %arg5: memref<1x128xf32, #tpu.memory_space<vmem>>, %arg6: memref<1x128xf32, #tpu.memory_space<vmem>>, %arg7: memref<1xf32, #tpu.memory_space<smem>>, %arg8: memref<8x1xf32, #tpu.memory_space<vmem>>, %arg9: memref<8x128xf32, #tpu.memory_space<vmem>>) attributes {dimension_semantics = [#tpu.dimension_semantics<parallel>, #tpu.dimension_semantics<arbitrary>], iteration_bounds = array<i64: 1, 2>, scalar_prefetch = 0 : i64, scratch_operands = 1 : i64, tpu.core_type = #tpu.core_type<tc>, window_params = [{transform_indices = @transform_0, window_bounds = array<i64: 4, 8, 128>}, {pipeline_mode = #tpu.pipeline_mode<synchronous>, transform_indices = @transform_1, window_bounds = array<i64: 128, 128>}, {pipeline_mode = #tpu.pipeline_mode<synchronous>, transform_indices = @transform_2, window_bounds = array<i64: 128, 128>}, {pipeline_mode = #tpu.pipeline_mode<synchronous>, transform_indices = @transform_3, window_bounds = array<i64: 1, 128>}, {pipeline_mode = #tpu.pipeline_mode<synchronous>, transform_indices = @transform_4, window_bounds = array<i64: 1, 128>}, {transform_indices = @transform_5, window_bounds = array<i64: 1>}, {transform_indices = @transform_6, window_bounds = array<i64: 8, 1>}]} {
    %c0_i32 = arith.constant 0 : i32
    %0 = arith.cmpi eq, %arg1, %c0_i32 : i32
    %1 = arith.extui %0 : i1 to i32
    %c0_i32_0 = arith.constant 0 : i32
    %2 = arith.cmpi ne, %1, %c0_i32_0 : i32
    scf.if %2 {
      %cst_18 = arith.constant 0.000000e+00 : f32
      %37 = vector.broadcast %cst_18 : f32 to vector<8x128xf32>
      %c0_19 = arith.constant 0 : index
      %c0_20 = arith.constant 0 : index
      %38 = vector.load %arg9[%c0_19, %c0_20] : memref<8x128xf32, #tpu.memory_space<vmem>>, vector<8x128xf32>
      tpu.vector_store %arg9[%c0_19, %c0_20], %37 {strides = array<i32>} : memref<8x128xf32, #tpu.memory_space<vmem>>, vector<8x128xf32>,
    } else {
    }
    %c0 = arith.constant 0 : index
    %c0_1 = arith.constant 0 : index
    %c0_2 = arith.constant 0 : index
    %3 = vector.load %arg2[%c0, %c0_1, %c0_2] : memref<4x8x128xf32, #tpu.memory_space<vmem>>, vector<4x8x128xf32>
    %4 = vector.shape_cast %3 : vector<4x8x128xf32> to vector<32x128xf32>
    %c0_3 = arith.constant 0 : index
    %c0_4 = arith.constant 0 : index
    %5 = vector.load %arg3[%c0_3, %c0_4] : memref<128x128xf32, #tpu.memory_space<vmem>>, vector<128x128xf32>
    %cst = arith.constant dense<0.000000e+00> : vector<32x128xf32>
    %6 = tpu.matmul %4, %5, %cst {dimension_numbers = #tpu.dot_dimension_numbers<[1], [0], [0], [1], [0, 0, 1, 1], [], []>} : vector<32x128xf32>, vector<128x128xf32>, vector<32x128xf32> -> vector<32x128xf32>
    %c0_5 = arith.constant 0 : index
    %c0_6 = arith.constant 0 : index
    %7 = vector.load %arg5[%c0_5, %c0_6] : memref<1x128xf32, #tpu.memory_space<vmem>>, vector<1x128xf32>
    %8 = vector.broadcast %7 : vector<1x128xf32> to vector<32x128xf32>
    %9 = arith.addf %6, %8 : vector<32x128xf32>
    %10 = vector.shape_cast %9 : vector<32x128xf32> to vector<4x8x128xf32>
    %c0_7 = arith.constant 0 : index
    %c0_8 = arith.constant 0 : index
    %11 = vector.load %arg4[%c0_7, %c0_8] : memref<128x128xf32, #tpu.memory_space<vmem>>, vector<128x128xf32>
    %c0_9 = arith.constant 0 : index
    %c0_10 = arith.constant 0 : index
    %12 = vector.load %arg9[%c0_9, %c0_10] : memref<8x128xf32, #tpu.memory_space<vmem>>, vector<8x128xf32>
    %cst_11 = arith.constant dense<0.000000e+00> : vector<8x128xf32>
    %13 = tpu.matmul %12, %11, %cst_11 {dimension_numbers = #tpu.dot_dimension_numbers<[1], [0], [0], [1], [0, 0, 1, 1], [], []>} : vector<8x128xf32>, vector<128x128xf32>, vector<8x128xf32> -> vector<8x128xf32>
    %14 = vector.extract_strided_slice %10 {offsets = [0, 0, 0], sizes = [1, 8, 128], strides = [1, 1, 1]} : vector<4x8x128xf32> to vector<1x8x128xf32>
    %15 = vector.shape_cast %14 : vector<1x8x128xf32> to vector<8x128xf32>
    %16 = arith.addf %13, %15 : vector<8x128xf32>
    %17 = math.tanh %16 : vector<8x128xf32>
    %cst_12 = arith.constant dense<0.000000e+00> : vector<8x128xf32>
    %18 = tpu.matmul %17, %11, %cst_12 {dimension_numbers = #tpu.dot_dimension_numbers<[1], [0], [0], [1], [0, 0, 1, 1], [], []>} : vector<8x128xf32>, vector<128x128xf32>, vector<8x128xf32> -> vector<8x128xf32>
    %19 = vector.extract_strided_slice %10 {offsets = [1, 0, 0], sizes = [1, 8, 128], strides = [1, 1, 1]} : vector<4x8x128xf32> to vector<1x8x128xf32>
    %20 = vector.shape_cast %19 : vector<1x8x128xf32> to vector<8x128xf32>
    %21 = arith.addf %18, %20 : vector<8x128xf32>
    %22 = math.tanh %21 : vector<8x128xf32>
    %cst_13 = arith.constant dense<0.000000e+00> : vector<8x128xf32>
    %23 = tpu.matmul %22, %11, %cst_13 {dimension_numbers = #tpu.dot_dimension_numbers<[1], [0], [0], [1], [0, 0, 1, 1], [], []>} : vector<8x128xf32>, vector<128x128xf32>, vector<8x128xf32> -> vector<8x128xf32>
    %24 = vector.extract_strided_slice %10 {offsets = [2, 0, 0], sizes = [1, 8, 128], strides = [1, 1, 1]} : vector<4x8x128xf32> to vector<1x8x128xf32>
    %25 = vector.shape_cast %24 : vector<1x8x128xf32> to vector<8x128xf32>
    %26 = arith.addf %23, %25 : vector<8x128xf32>
    %27 = math.tanh %26 : vector<8x128xf32>
    %cst_14 = arith.constant dense<0.000000e+00> : vector<8x128xf32>
    %28 = tpu.matmul %27, %11, %cst_14 {dimension_numbers = #tpu.dot_dimension_numbers<[1], [0], [0], [1], [0, 0, 1, 1], [], []>} : vector<8x128xf32>, vector<128x128xf32>, vector<8x128xf32> -> vector<8x128xf32>
    %29 = vector.extract_strided_slice %10 {offsets = [3, 0, 0], sizes = [1, 8, 128], strides = [1, 1, 1]} : vector<4x8x128xf32> to vector<1x8x128xf32>
    %30 = vector.shape_cast %29 : vector<1x8x128xf32> to vector<8x128xf32>
    %31 = arith.addf %28, %30 : vector<8x128xf32>
    %32 = math.tanh %31 : vector<8x128xf32>
    %c0_15 = arith.constant 0 : index
    %c0_16 = arith.constant 0 : index
    %33 = vector.load %arg9[%c0_15, %c0_16] : memref<8x128xf32, #tpu.memory_space<vmem>>, vector<8x128xf32>
    tpu.vector_store %arg9[%c0_15, %c0_16], %32 {strides = array<i32>} : memref<8x128xf32, #tpu.memory_space<vmem>>, vector<8x128xf32>,
    %c1_i32 = arith.constant 1 : i32
    %34 = arith.cmpi eq, %arg1, %c1_i32 : i32
    %35 = arith.extui %34 : i1 to i32
    %c0_i32_17 = arith.constant 0 : i32
    %36 = arith.cmpi ne, %35, %c0_i32_17 : i32
    scf.if %36 {
      %c0_18 = arith.constant 0 : index
      %c0_19 = arith.constant 0 : index
      %37 = vector.load %arg6[%c0_18, %c0_19] : memref<1x128xf32, #tpu.memory_space<vmem>>, vector<1x128xf32>
      %38 = vector.broadcast %37 : vector<1x128xf32> to vector<8x128xf32>
      %39 = arith.mulf %32, %38 : vector<8x128xf32>
      %cst_20 = arith.constant dense<0.000000e+00> : vector<8xf32>
      %40 = vector.multi_reduction <add>, %39, %cst_20 [1] : vector<8x128xf32> to vector<8xf32>
      %41 = vector.shape_cast %40 : vector<8xf32> to vector<8x1xf32>
      %c0_21 = arith.constant 0 : index
      %42 = memref.load %arg7[%c0_21] : memref<1xf32, #tpu.memory_space<smem>>
      %43 = vector.broadcast %42 : f32 to vector<8x1xf32>
      %44 = arith.addf %41, %43 : vector<8x1xf32>
      %c0_22 = arith.constant 0 : index
      %c0_23 = arith.constant 0 : index
      %45 = vector.load %arg8[%c0_22, %c0_23] : memref<8x1xf32, #tpu.memory_space<vmem>>, vector<8x1xf32>
      tpu.vector_store %arg8[%c0_22, %c0_23], %44 {strides = array<i32>} : memref<8x1xf32, #tpu.memory_space<vmem>>, vector<8x1xf32>,
    } else {
    }
    return
  }
  func.func @transform_0(%arg0: i32, %arg1: i32) -> (i32, i32, i32) {
    %c0_i32 = arith.constant 0 : i32
    %c0_i32_0 = arith.constant 0 : i32
    return %arg1, %arg0, %c0_i32 : i32, i32, i32
  }
  func.func @transform_1(%arg0: i32, %arg1: i32) -> (i32, i32) {
    %c0_i32 = arith.constant 0 : i32
    %c0_i32_0 = arith.constant 0 : i32
    %c0_i32_1 = arith.constant 0 : i32
    return %c0_i32, %c0_i32_0 : i32, i32
  }
  func.func @transform_2(%arg0: i32, %arg1: i32) -> (i32, i32) {
    %c0_i32 = arith.constant 0 : i32
    %c0_i32_0 = arith.constant 0 : i32
    %c0_i32_1 = arith.constant 0 : i32
    return %c0_i32, %c0_i32_0 : i32, i32
  }
  func.func @transform_3(%arg0: i32, %arg1: i32) -> (i32, i32) {
    %c0_i32 = arith.constant 0 : i32
    %c0_i32_0 = arith.constant 0 : i32
    %c0_i32_1 = arith.constant 0 : i32
    return %c0_i32, %c0_i32_0 : i32, i32
  }
  func.func @transform_4(%arg0: i32, %arg1: i32) -> (i32, i32) {
    %c0_i32 = arith.constant 0 : i32
    %c0_i32_0 = arith.constant 0 : i32
    %c0_i32_1 = arith.constant 0 : i32
    return %c0_i32, %c0_i32_0 : i32, i32
  }
  func.func @transform_5(%arg0: i32, %arg1: i32) -> i32 {
    %c0_i32 = arith.constant 0 : i32
    %c0_i32_0 = arith.constant 0 : i32
    return %c0_i32 : i32
  }
  func.func @transform_6(%arg0: i32, %arg1: i32) -> (i32, i32) {
    %c0_i32 = arith.constant 0 : i32
    %c0_i32_0 = arith.constant 0 : i32
    return %arg0, %c0_i32 : i32, i32
  }
}

</mosaic_0001>

<llo_original>
// kernel: _lambda_.1
$region0: #{_lambda_.1}
  #allocation0 [shape = 'u32[]', space=smem, size = 0x4, offset = 0x4, fixed_abs, tag = 'smem constant byte address 0x4 - core index']
  #allocation1 [shape = 'u32[144,128]{1,0:T(1,128)}', space=vmem, size = 0x12000, scoped, tag = 'internal scratch']
  #allocation2 [shape = 'f32[8,128]{1,0:T(8,128)}', space=vmem, size = 0x1000, scoped, tag = 'scratch operand']
  #allocation3 [shape = 'f32[1]{0:T(128)S(6)}', space=smem, size = 0x200, scoped, tag = 'scoped memory for _lambda_.1']
  %s0 = inlined_call_operand.vmem [shape: f32[8,8,128], index: 0, kind: input, shape index: {}]
  %s1 = inlined_call_operand.vmem [shape: f32[128,128], index: 1, kind: input, shape index: {}]
  %s2 = inlined_call_operand.vmem [shape: f32[128,128], index: 2, kind: input, shape index: {}]
  %s3 = inlined_call_operand.vmem [shape: f32[1,128], index: 3, kind: input, shape index: {}]
  %s4 = inlined_call_operand.vmem [shape: f32[1,128], index: 4, kind: input, shape index: {}]
  %s5 = inlined_call_operand.<no memory space> [shape: f32[1], index: 5, kind: input, shape index: {}]
  %s6 = inlined_call_operand.vmem [shape: f32[8,1], index: 6, kind: output, shape index: {}]
  %s7 = sld [smem:[#allocation0]]
  $region65: #{_lambda_.1} parent=0
    _
  %s9 = ssub.s32 1, %s7
  %s10 = scalar_select 0, %s9, %s7
  %11 = sst [smem:[#allocation3]] %s5
  loop: start=0, step=1, limit=4
  $region2: #{_lambda_.1} parent=0 // loop_pre_header
    _
  $region3: #{_lambda_.1} parent=0 // loop_header
    %s13 = sphi 0, %s17
    %p14 = scmp.ge.s32.totalorder %s13, 4
    %s20 = sphi 0, %s32
    %s21 = sphi 0, %s28
    %s22 = sphi 0, %s20
    %s23 = sphi 0, %s21
    %s24 = sphi 0, %s22
    %s25 = sphi 0, %s23
    %s37 = sphi 0, %s39
    %s40 = sphi 0, %s37
    %s41 = sphi 0, %s40
    %s57 = sphi 0, %s41
    %s61 = sphi 0, %s61
    %s63 = sphi 0, %s61
    %s64 = sphi 0, %s63
    %s78 = sphi 0, %s64
    %s82 = sphi 0, %s82
    %s84 = sphi 0, %s82
    %s85 = sphi 0, %s84
    %s99 = sphi 0, %s85
    %s103 = sphi 0, %s103
    %s105 = sphi 0, %s103
    %s106 = sphi 0, %s105
    %s120 = sphi 0, %s106
    %s124 = sphi 0, %s124
    %s126 = sphi 0, %s124
    %s127 = sphi 0, %s126
    %s141 = sphi 0, %s127
    %s145 = sphi 0, %s145
    %s147 = sphi 0, %s145
    %s148 = sphi 0, %s147
    %s162 = sphi 0, %s148
    %s168 = sphi 0, %s170
    %s171 = sphi 0, %s168
    %s172 = sphi 0, %s171
    %s188 = sphi 0, %s172
  $region4: #{_lambda_.1} parent=0 // loop_header_branch
    %16 = sbr.rel (%p14) target = $region8
  $region5: #{_lambda_.1} parent=0 // loop_body
    %s18 = ssub.s32 %s13, 1
    %s19 = ssub.s32 %s13, 2
    %s26 = sadd.s32 1, %s21
    %p27 = scmp.ge.s32.totalorder %s26, 2
    %s28 = scalar_select %p27, 0, %s26
    %s29 = sadd.s32 1, %s20
    %s30 = scalar_select %p27, %s29, %s20
    %p31 = scmp.ge.s32.totalorder %s30, 1
    %s32 = scalar_select %p31, 0, %s30
    %s33 = ssub.s32 %s21, %s28
    %s34 = ssub.s32 %s20, %s32
    %s35 = sor.u32 %s33, %s34
    %p36 = scmp.eq.s32.totalorder %s35, 0
    %s38 = sadd.s32 %s37, 1
    %s39 = scalar_select %p36, %s37, %s38
    %p42 = pneg %p36
    %p43 = scmp.eq.s32.totalorder %s13, 1
    %p44 = por %p42, %p43
    %p45 = scmp.ne.s32.totalorder %s37, %s40
    %p46 = scmp.eq.s32.totalorder %s13, 0
    %p47 = por %p45, %p46
    %p48 = scmp.ne.s32.totalorder %s37, %s40
    %p49 = scmp.eq.s32.totalorder %s18, 1
    %p50 = por %p48, %p49
    %p51 = scmp.ne.s32.totalorder %s40, %s41
    %p52 = scmp.eq.s32.totalorder %s18, 0
    %p53 = por %p51, %p52
    %p54 = scmp.ne.s32.totalorder %s40, %s41
    %p55 = scmp.eq.s32.totalorder %s19, 1
    %p56 = por %p54, %p55
    %p58 = scmp.ne.s32.totalorder %s41, %s57
    %p59 = scmp.eq.s32.totalorder %s19, 0
    %p60 = por %p58, %p59
    %s62 = sadd.s32 %s61, 1
    %p65 = scmp.eq.s32.totalorder %s13, 1
    %p66 = scmp.ne.s32.totalorder %s61, %s63
    %p67 = scmp.eq.s32.totalorder %s13, 0
    %p68 = por %p66, %p67
    %p69 = scmp.ne.s32.totalorder %s61, %s63
    %p70 = scmp.eq.s32.totalorder %s18, 1
    %p71 = por %p69, %p70
    %p72 = scmp.ne.s32.totalorder %s63, %s64
    %p73 = scmp.eq.s32.totalorder %s18, 0
    %p74 = por %p72, %p73
    %p75 = scmp.ne.s32.totalorder %s63, %s64
    %p76 = scmp.eq.s32.totalorder %s19, 1
    %p77 = por %p75, %p76
    %p79 = scmp.ne.s32.totalorder %s64, %s78
    %p80 = scmp.eq.s32.totalorder %s19, 0
    %p81 = por %p79, %p80
    %s83 = sadd.s32 %s82, 1
    %p86 = scmp.eq.s32.totalorder %s13, 1
    %p87 = scmp.ne.s32.totalorder %s82, %s84
    %p88 = scmp.eq.s32.totalorder %s13, 0
    %p89 = por %p87, %p88
    %p90 = scmp.ne.s32.totalorder %s82, %s84
    %p91 = scmp.eq.s32.totalorder %s18, 1
    %p92 = por %p90, %p91
    %p93 = scmp.ne.s32.totalorder %s84, %s85
    %p94 = scmp.eq.s32.totalorder %s18, 0
    %p95 = por %p93, %p94
    %p96 = scmp.ne.s32.totalorder %s84, %s85
    %p97 = scmp.eq.s32.totalorder %s19, 1
    %p98 = por %p96, %p97
    %p100 = scmp.ne.s32.totalorder %s85, %s99
    %p101 = scmp.eq.s32.totalorder %s19, 0
    %p102 = por %p100, %p101
    %s104 = sadd.s32 %s103, 1
    %p107 = scmp.eq.s32.totalorder %s13, 1
    %p108 = scmp.ne.s32.totalorder %s103, %s105
    %p109 = scmp.eq.s32.totalorder %s13, 0
    %p110 = por %p108, %p109
    %p111 = scmp.ne.s32.totalorder %s103, %s105
    %p112 = scmp.eq.s32.totalorder %s18, 1
    %p113 = por %p111, %p112
    %p114 = scmp.ne.s32.totalorder %s105, %s106
    %p115 = scmp.eq.s32.totalorder %s18, 0
    %p116 = por %p114, %p115
    %p117 = scmp.ne.s32.totalorder %s105, %s106
    %p118 = scmp.eq.s32.totalorder %s19, 1
    %p119 = por %p117, %p118
    %p121 = scmp.ne.s32.totalorder %s106, %s120
    %p122 = scmp.eq.s32.totalorder %s19, 0
    %p123 = por %p121, %p122
    %s125 = sadd.s32 %s124, 1
    %p128 = scmp.eq.s32.totalorder %s13, 1
    %p129 = scmp.ne.s32.totalorder %s124, %s126
    %p130 = scmp.eq.s32.totalorder %s13, 0
    %p131 = por %p129, %p130
    %p132 = scmp.ne.s32.totalorder %s124, %s126
    %p133 = scmp.eq.s32.totalorder %s18, 1
    %p134 = por %p132, %p133
    %p135 = scmp.ne.s32.totalorder %s126, %s127
    %p136 = scmp.eq.s32.totalorder %s18, 0
    %p137 = por %p135, %p136
    %p138 = scmp.ne.s32.totalorder %s126, %s127
    %p139 = scmp.eq.s32.totalorder %s19, 1
    %p140 = por %p138, %p139
    %p142 = scmp.ne.s32.totalorder %s127, %s141
    %p143 = scmp.eq.s32.totalorder %s19, 0
    %p144 = por %p142, %p143
    %s146 = sadd.s32 %s145, 1
    %p149 = scmp.eq.s32.totalorder %s13, 1
    %p150 = scmp.ne.s32.totalorder %s145, %s147
    %p151 = scmp.eq.s32.totalorder %s13, 0
    %p152 = por %p150, %p151
    %p153 = scmp.ne.s32.totalorder %s145, %s147
    %p154 = scmp.eq.s32.totalorder %s18, 1
    %p155 = por %p153, %p154
    %p156 = scmp.ne.s32.totalorder %s147, %s148
    %p157 = scmp.eq.s32.totalorder %s18, 0
    %p158 = por %p156, %p157
    %p159 = scmp.ne.s32.totalorder %s147, %s148
    %p160 = scmp.eq.s32.totalorder %s19, 1
    %p161 = por %p159, %p160
    %p163 = scmp.ne.s32.totalorder %s148, %s162
    %p164 = scmp.eq.s32.totalorder %s19, 0
    %p165 = por %p163, %p164
    %s166 = ssub.s32 %s20, %s32
    %p167 = scmp.eq.s32.totalorder %s166, 0
    %s169 = sadd.s32 %s168, 1
    %s170 = scalar_select %p167, %s168, %s169
    %p173 = pneg %p167
    %p174 = scmp.eq.s32.totalorder %s13, 1
    %p175 = por %p173, %p174
    %p176 = scmp.ne.s32.totalorder %s168, %s171
    %p177 = scmp.eq.s32.totalorder %s13, 0
    %p178 = por %p176, %p177
    %p179 = scmp.ne.s32.totalorder %s168, %s171
    %p180 = scmp.eq.s32.totalorder %s18, 1
    %p181 = por %p179, %p180
    %p182 = scmp.ne.s32.totalorder %s171, %s172
    %p183 = scmp.eq.s32.totalorder %s18, 0
    %p184 = por %p182, %p183
    %p185 = scmp.ne.s32.totalorder %s171, %s172
    %p186 = scmp.eq.s32.totalorder %s19, 1
    %p187 = por %p185, %p186
    %p189 = scmp.ne.s32.totalorder %s172, %s188
    %p190 = scmp.eq.s32.totalorder %s19, 0
    %p191 = por %p189, %p190
    %p192 = scmp.le.s32.totalorder 1, %s13
    %p193 = scmp.lt.s32.totalorder %s13, 3
    %p194 = pnand %p192, %p193
    %p195 = pneg %p194
    // Predicated region
    $region9: #{_lambda_.1} parent=5 // pred_check
      _
    $region10: #{_lambda_.1} parent=5 // pred_check_branch
      %197 = sbr.rel (%p194) target = $region12
    $region11: #{_lambda_.1} parent=5 // pred_region
      %s198 = ssub.s32 %s13, 1
      // Predicated region
      $region13: #{_lambda_.1} parent=11 // pred_check
        %p199 = pneg %p74
      $region14: #{_lambda_.1} parent=11 // pred_check_branch
        %201 = sbr.rel (%p199) target = $region16
      $region15: #{_lambda_.1} parent=11 // pred_region
        _
      $region16: #{_lambda_.1} parent=11 // pred_fallthru
        _
      // Predicated region
      $region17: #{_lambda_.1} parent=11 // pred_check
        %p202 = pneg %p95
      $region18: #{_lambda_.1} parent=11 // pred_check_branch
        %204 = sbr.rel (%p202) target = $region20
      $region19: #{_lambda_.1} parent=11 // pred_region
        _
      $region20: #{_lambda_.1} parent=11 // pred_fallthru
        _
      // Predicated region
      $region21: #{_lambda_.1} parent=11 // pred_check
        %p205 = pneg %p116
      $region22: #{_lambda_.1} parent=11 // pred_check_branch
        %207 = sbr.rel (%p205) target = $region24
      $region23: #{_lambda_.1} parent=11 // pred_region
        _
      $region24: #{_lambda_.1} parent=11 // pred_fallthru
        _
      // Predicated region
      $region25: #{_lambda_.1} parent=11 // pred_check
        %p208 = pneg %p137
      $region26: #{_lambda_.1} parent=11 // pred_check_branch
        %210 = sbr.rel (%p208) target = $region28
      $region27: #{_lambda_.1} parent=11 // pred_region
        _
      $region28: #{_lambda_.1} parent=11 // pred_fallthru
        _
      // Predicated region
      $region29: #{_lambda_.1} parent=11 // pred_check
        %p211 = pneg %p158
      $region30: #{_lambda_.1} parent=11 // pred_check_branch
        %213 = sbr.rel (%p211) target = $region32
      $region31: #{_lambda_.1} parent=11 // pred_region
        _
      $region32: #{_lambda_.1} parent=11 // pred_fallthru
        _
    $region12: #{_lambda_.1} parent=5 // pred_fallthru
      _
    %p214 = scmp.lt.s32.totalorder %s13, 2
    // Predicated region
    $region33: #{_lambda_.1} parent=5 // pred_check
      %p215 = pneg %p214
    $region34: #{_lambda_.1} parent=5 // pred_check_branch
      %217 = sbr.rel (%p215) target = $region36
    $region35: #{_lambda_.1} parent=5 // pred_region
      // Predicated region
      $region37: #{_lambda_.1} parent=35 // pred_check
        %p218 = pneg %p47
      $region38: #{_lambda_.1} parent=35 // pred_check_branch
        %220 = sbr.rel (%p218) target = $region40
      $region39: #{_lambda_.1} parent=35 // pred_region
        %s221 = smul.u32 4, %s21
        %p222 = scmp.lt.s32.totalorder %s221, 7
        %s223 = scalar_select %p222, %s221, 7
        %p224 = scmp.lt.s32.totalorder %s20, 0
        %s225 = scalar_select %p224, %s20, 0
        %s226 = sadd.s32 %s225, %s223
        %s227 = smul.addr %s226, 8
        %s228 = scalar_lea.vmem %s0, %s227
        %s229 = smul.u32 4, %s21
      $region40: #{_lambda_.1} parent=35 // pred_fallthru
        _
    $region36: #{_lambda_.1} parent=5 // pred_fallthru
      _
    %p230 = scmp.le.s32.totalorder 1, %s13
    %p231 = scmp.lt.s32.totalorder %s13, 3
    %p232 = pnand %p230, %p231
    %p233 = pneg %p232
    // Predicated region
    $region41: #{_lambda_.1} parent=5 // pred_check
      _
    $region42: #{_lambda_.1} parent=5 // pred_check_branch
      %235 = sbr.rel (%p232) target = $region44
    $region43: #{_lambda_.1} parent=5 // pred_region
      %s236 = ssub.s32 %s13, 1
      %s237 = smul.u32 4, %s23
      %p238 = scmp.lt.s32.totalorder %s237, 7
      %s239 = scalar_select %p238, %s237, 7
      %p240 = scmp.lt.s32.totalorder %s22, 0
      %s241 = scalar_select %p240, %s22, 0
      %s242 = sadd.s32 %s241, %s239
      %s243 = smul.addr %s242, 8
      %s244 = scalar_lea.vmem %s0, %s243
      %p245 = pneg %p53
      %p246 = pneg %p50
      %p247 = pneg %p74
      %p248 = pneg %p71
      %p249 = pneg %p95
      %p250 = pneg %p92
      %p251 = pneg %p116
      %p252 = pneg %p113
      %p253 = pneg %p137
      %p254 = pneg %p134
      %p255 = pneg %p158
      %p256 = pneg %p155
      %p257 = pneg %p184
      %p258 = pneg %p181
      %p259 = scmp.lt.s32.totalorder %s22, 0
      %s260 = scalar_select %p259, %s22, 0
      %s261 = smul.addr %s260, 8
      %s262 = scalar_lea.vmem %s6, %s261
      %s263 = smul.u32 4, %s23
      %p264 = scmp.lt.s32.totalorder %s263, 7
      %s265 = scalar_select %p264, %s263, 7
      %p266 = scmp.lt.s32.totalorder %s22, 0
      %s267 = scalar_select %p266, %s22, 0
      %s268 = sadd.s32 %s267, %s265
      %s269 = smul.addr %s268, 8
      %s270 = scalar_lea.vmem %s0, %s269
      %s271 = smul.u32 4, %s23
      %p272 = scmp.lt.s32.totalorder %s22, 0
      %s273 = scalar_select %p272, %s22, 0
      %s274 = smul.addr %s273, 8
      %s275 = scalar_lea.vmem %s6, %s274
      %p276 = scmp.eq.s32.totalorder %s23, 0
      // Predicated region
      $region45: #{_lambda_.1} parent=43 // pred_check
        %p277 = pneg %p276
      $region46: #{_lambda_.1} parent=43 // pred_check_branch
        %279 = sbr.rel (%p277) target = $region48
      $region47: #{_lambda_.1} parent=43 // pred_region
        %280 = vst [vmem:[#allocation2] sm:$0xff] 0.0
      $region48: #{_lambda_.1} parent=43 // pred_fallthru
        _
      %v281 = vld [vmem:[%s270] sm:$0xff]
      %v282 = vld [vmem:[%s270 + $0x8] sm:$0xff]
      %v283 = vld [vmem:[%s270 + $0x10] sm:$0xff]
      %v284 = vld [vmem:[%s270 + $0x18] sm:$0xff]
      %v285 = vld [vmem:[%s1] sm:$0xff]
      %v286 = vld [vmem:[%s1 + $0x8] sm:$0xff]
      %v287 = vld [vmem:[%s1 + $0x10] sm:$0xff]
      %v288 = vld [vmem:[%s1 + $0x18] sm:$0xff]
      %v289 = vld [vmem:[%s1 + $0x20] sm:$0xff]
      %v290 = vld [vmem:[%s1 + $0x28] sm:$0xff]
      %v291 = vld [vmem:[%s1 + $0x30] sm:$0xff]
      %v292 = vld [vmem:[%s1 + $0x38] sm:$0xff]
      %v293 = vld [vmem:[%s1 + $0x40] sm:$0xff]
      %v294 = vld [vmem:[%s1 + $0x48] sm:$0xff]
      %v295 = vld [vmem:[%s1 + $0x50] sm:$0xff]
      %v296 = vld [vmem:[%s1 + $0x58] sm:$0xff]
      %v297 = vld [vmem:[%s1 + $0x60] sm:$0xff]
      %v298 = vld [vmem:[%s1 + $0x68] sm:$0xff]
      %v299 = vld [vmem:[%s1 + $0x70] sm:$0xff]
      %v300 = vld [vmem:[%s1 + $0x78] sm:$0xff]
      %v301 = vld [vmem:[%s3] sm:$0x1]
      %v303 = vlaneseq
      %v304 = vshrl.u32 %v303, 7
      %v305 = vsub.s32 0, %v304
      %v306 = vrot.slane %v301, %v305
      %308 = vmatprep.subr.mxu0 0.0
      %309 = vmatpush1.msra.mxu0 %v300
      %310 = vmatprep.subr.mxu0 0.0
      %311 = vmatpush1.msra.mxu0 %v299
      %312 = vmatprep.subr.mxu0 0.0
      %313 = vmatpush1.msra.mxu0 %v298
      %314 = vmatprep.subr.mxu0 0.0
      %315 = vmatpush1.msra.mxu0 %v297
      %316 = vmatprep.subr.mxu0 0.0
      %317 = vmatpush1.msra.mxu0 %v296
      %318 = vmatprep.subr.mxu0 0.0
      %319 = vmatpush1.msra.mxu0 %v295
      %320 = vmatprep.subr.mxu0 0.0
      %321 = vmatpush1.msra.mxu0 %v294
      %322 = vmatprep.subr.mxu0 0.0
      %323 = vmatpush1.msra.mxu0 %v293
      %324 = vmatprep.subr.mxu0 0.0
      %325 = vmatpush1.msra.mxu0 %v292
      %326 = vmatprep.subr.mxu0 0.0
      %327 = vmatpush1.msra.mxu0 %v291
      %328 = vmatprep.subr.mxu0 0.0
      %329 = vmatpush1.msra.mxu0 %v290
      %330 = vmatprep.subr.mxu0 0.0
      %331 = vmatpush1.msra.mxu0 %v289
      %332 = vmatprep.subr.mxu0 0.0
      %333 = vmatpush1.msra.mxu0 %v288
      %334 = vmatprep.subr.mxu0 0.0
      %335 = vmatpush1.msra.mxu0 %v287
      %336 = vmatprep.subr.mxu0 0.0
      %337 = vmatpush1.msra.mxu0 %v286
      %338 = vmatprep.subr.mxu0 0.0
      %339 = vmatpush1.msra.mxu0 %v285
      %340 = vmatprep.subr.mxu0 0.0
      %341 = vmatpush2.msra.mxu0 0.0
      %342 = vmatprep.subr.mxu0 0.0
      %343 = vmatpush2.msra.mxu0 0.0
      %344 = vmatprep.subr.mxu0 0.0
      %345 = vmatpush2.msra.mxu0 0.0
      %346 = vmatprep.subr.mxu0 0.0
      %347 = vmatpush2.msra.mxu0 0.0
      %348 = vmatprep.subr.mxu0 0.0
      %349 = vmatpush2.msra.mxu0 0.0
      %350 = vmatprep.subr.mxu0 0.0
      %351 = vmatpush2.msra.mxu0 0.0
      %352 = vmatprep.subr.mxu0 0.0
      %353 = vmatpush2.msra.mxu0 0.0
      %354 = vmatprep.subr.mxu0 0.0
      %355 = vmatpush2.msra.mxu0 0.0
      %356 = vmatprep.subr.mxu0 0.0
      %357 = vmatpush2.msra.mxu0 0.0
      %358 = vmatprep.subr.mxu0 0.0
      %359 = vmatpush2.msra.mxu0 0.0
      %360 = vmatprep.subr.mxu0 0.0
      %361 = vmatpush2.msra.mxu0 0.0
      %362 = vmatprep.subr.mxu0 0.0
      %363 = vmatpush2.msra.mxu0 0.0
      %364 = vmatprep.subr.mxu0 0.0
      %365 = vmatpush2.msra.mxu0 0.0
      %366 = vmatprep.subr.mxu0 0.0
      %367 = vmatpush2.msra.mxu0 0.0
      %368 = vmatprep.subr.mxu0 0.0
      %369 = vmatpush2.msra.mxu0 0.0
      %370 = vmatprep.subr.mxu0 0.0
      %371 = vmatpush2.msra.mxu0 0.0
      %372 = vmatprep.mubr.f32.mxu0 0.0
      %373 = vmatmul.mubr.f32.gmra.mxu0 %v281
      %v374 = vpop.f32.mrf.mxu0
      %v375 = vadd.f32 %v306, %v374
      %v376 = vpop.f32.mrf.mxu0
      %377 = vmatprep.mubr.f32.mxu0 0.0
      %378 = vmatmul.mubr.f32.gmra.mxu0 %v282
      %v379 = vpop.f32.mrf.mxu0
      %v380 = vadd.f32 %v306, %v379
      %v381 = vpop.f32.mrf.mxu0
      %382 = vmatprep.mubr.f32.mxu0 0.0
      %383 = vmatmul.mubr.f32.gmra.mxu0 %v283
      %v384 = vpop.f32.mrf.mxu0
      %v385 = vadd.f32 %v306, %v384
      %v386 = vpop.f32.mrf.mxu0
      %387 = vmatprep.mubr.f32.mxu0 0.0
      %388 = vmatmul.mubr.f32.gmra.mxu0 %v284
      %v389 = vpop.f32.mrf.mxu0
      %v390 = vadd.f32 %v306, %v389
      %v391 = vpop.f32.mrf.mxu0
      %392 = vdwg.mxu0
      %v393 = vld [vmem:[%s2] sm:$0xff]
      %v394 = vld [vmem:[%s2 + $0x8] sm:$0xff]
      %v395 = vld [vmem:[%s2 + $0x10] sm:$0xff]
      %v396 = vld [vmem:[%s2 + $0x18] sm:$0xff]
      %v397 = vld [vmem:[%s2 + $0x20] sm:$0xff]
      %v398 = vld [vmem:[%s2 + $0x28] sm:$0xff]
      %v399 = vld [vmem:[%s2 + $0x30] sm:$0xff]
      %v400 = vld [vmem:[%s2 + $0x38] sm:$0xff]
      %v401 = vld [vmem:[%s2 + $0x40] sm:$0xff]
      %v402 = vld [vmem:[%s2 + $0x48] sm:$0xff]
      %v403 = vld [vmem:[%s2 + $0x50] sm:$0xff]
      %v404 = vld [vmem:[%s2 + $0x58] sm:$0xff]
      %v405 = vld [vmem:[%s2 + $0x60] sm:$0xff]
      %v406 = vld [vmem:[%s2 + $0x68] sm:$0xff]
      %v407 = vld [vmem:[%s2 + $0x70] sm:$0xff]
      %v408 = vld [vmem:[%s2 + $0x78] sm:$0xff]
      %v409 = vld [vmem:[#allocation2] sm:$0xff]
      %410 = vmatprep.subr.mxu0 0.0
      %411 = vmatpush1.msra.mxu0 %v408
      %412 = vmatprep.subr.mxu0 0.0
      %413 = vmatpush1.msra.mxu0 %v407
      %414 = vmatprep.subr.mxu0 0.0
      %415 = vmatpush1.msra.mxu0 %v406
      %416 = vmatprep.subr.mxu0 0.0
      %417 = vmatpush1.msra.mxu0 %v405
      %418 = vmatprep.subr.mxu0 0.0
      %419 = vmatpush1.msra.mxu0 %v404
      %420 = vmatprep.subr.mxu0 0.0
      %421 = vmatpush1.msra.mxu0 %v403
      %422 = vmatprep.subr.mxu0 0.0
      %423 = vmatpush1.msra.mxu0 %v402
      %424 = vmatprep.subr.mxu0 0.0
      %425 = vmatpush1.msra.mxu0 %v401
      %426 = vmatprep.subr.mxu0 0.0
      %427 = vmatpush1.msra.mxu0 %v400
      %428 = vmatprep.subr.mxu0 0.0
      %429 = vmatpush1.msra.mxu0 %v399
      %430 = vmatprep.subr.mxu0 0.0
      %431 = vmatpush1.msra.mxu0 %v398
      %432 = vmatprep.subr.mxu0 0.0
      %433 = vmatpush1.msra.mxu0 %v397
      %434 = vmatprep.subr.mxu0 0.0
      %435 = vmatpush1.msra.mxu0 %v396
      %436 = vmatprep.subr.mxu0 0.0
      %437 = vmatpush1.msra.mxu0 %v395
      %438 = vmatprep.subr.mxu0 0.0
      %439 = vmatpush1.msra.mxu0 %v394
      %440 = vmatprep.subr.mxu0 0.0
      %441 = vmatpush1.msra.mxu0 %v393
      %442 = vmatprep.subr.mxu0 0.0
      %443 = vmatpush2.msra.mxu0 0.0
      %444 = vmatprep.subr.mxu0 0.0
      %445 = vmatpush2.msra.mxu0 0.0
      %446 = vmatprep.subr.mxu0 0.0
      %447 = vmatpush2.msra.mxu0 0.0
      %448 = vmatprep.subr.mxu0 0.0
      %449 = vmatpush2.msra.mxu0 0.0
      %450 = vmatprep.subr.mxu0 0.0
      %451 = vmatpush2.msra.mxu0 0.0
      %452 = vmatprep.subr.mxu0 0.0
      %453 = vmatpush2.msra.mxu0 0.0
      %454 = vmatprep.subr.mxu0 0.0
      %455 = vmatpush2.msra.mxu0 0.0
      %456 = vmatprep.subr.mxu0 0.0
      %457 = vmatpush2.msra.mxu0 0.0
      %458 = vmatprep.subr.mxu0 0.0
      %459 = vmatpush2.msra.mxu0 0.0
      %460 = vmatprep.subr.mxu0 0.0
      %461 = vmatpush2.msra.mxu0 0.0
      %462 = vmatprep.subr.mxu0 0.0
      %463 = vmatpush2.msra.mxu0 0.0
      %464 = vmatprep.subr.mxu0 0.0
      %465 = vmatpush2.msra.mxu0 0.0
      %466 = vmatprep.subr.mxu0 0.0
      %467 = vmatpush2.msra.mxu0 0.0
      %468 = vmatprep.subr.mxu0 0.0
      %469 = vmatpush2.msra.mxu0 0.0
      %470 = vmatprep.subr.mxu0 0.0
      %471 = vmatpush2.msra.mxu0 0.0
      %472 = vmatprep.subr.mxu0 0.0
      %473 = vmatpush2.msra.mxu0 0.0
      %474 = vmatprep.mubr.f32.mxu0 0.0
      %475 = vmatmul.mubr.f32.gmra.mxu0 %v409
      %v476 = vpop.f32.mrf.mxu0
      %v477 = vadd.f32 %v375, %v476
      %v478 = vpop.f32.mrf.mxu0
      %479 = vdwg.mxu0
      %v480 = vtanh.pop %v477
      %481 = vmatprep.subr.mxu0 0.0
      %482 = vmatpush1.msra.mxu0 %v408
      %483 = vmatprep.subr.mxu0 0.0
      %484 = vmatpush1.msra.mxu0 %v407
      %485 = vmatprep.subr.mxu0 0.0
      %486 = vmatpush1.msra.mxu0 %v406
      %487 = vmatprep.subr.mxu0 0.0
      %488 = vmatpush1.msra.mxu0 %v405
      %489 = vmatprep.subr.mxu0 0.0
      %490 = vmatpush1.msra.mxu0 %v404
      %491 = vmatprep.subr.mxu0 0.0
      %492 = vmatpush1.msra.mxu0 %v403
      %493 = vmatprep.subr.mxu0 0.0
      %494 = vmatpush1.msra.mxu0 %v402
      %495 = vmatprep.subr.mxu0 0.0
      %496 = vmatpush1.msra.mxu0 %v401
      %497 = vmatprep.subr.mxu0 0.0
      %498 = vmatpush1.msra.mxu0 %v400
      %499 = vmatprep.subr.mxu0 0.0
      %500 = vmatpush1.msra.mxu0 %v399
      %501 = vmatprep.subr.mxu0 0.0
      %502 = vmatpush1.msra.mxu0 %v398
      %503 = vmatprep.subr.mxu0 0.0
      %504 = vmatpush1.msra.mxu0 %v397
      %505 = vmatprep.subr.mxu0 0.0
      %506 = vmatpush1.msra.mxu0 %v396
      %507 = vmatprep.subr.mxu0 0.0
      %508 = vmatpush1.msra.mxu0 %v395
      %509 = vmatprep.subr.mxu0 0.0
      %510 = vmatpush1.msra.mxu0 %v394
      %511 = vmatprep.subr.mxu0 0.0
      %512 = vmatpush1.msra.mxu0 %v393
      %513 = vmatprep.subr.mxu0 0.0
      %514 = vmatpush2.msra.mxu0 0.0
      %515 = vmatprep.subr.mxu0 0.0
      %516 = vmatpush2.msra.mxu0 0.0
      %517 = vmatprep.subr.mxu0 0.0
      %518 = vmatpush2.msra.mxu0 0.0
      %519 = vmatprep.subr.mxu0 0.0
      %520 = vmatpush2.msra.mxu0 0.0
      %521 = vmatprep.subr.mxu0 0.0
      %522 = vmatpush2.msra.mxu0 0.0
      %523 = vmatprep.subr.mxu0 0.0
      %524 = vmatpush2.msra.mxu0 0.0
      %525 = vmatprep.subr.mxu0 0.0
      %526 = vmatpush2.msra.mxu0 0.0
      %527 = vmatprep.subr.mxu0 0.0
      %528 = vmatpush2.msra.mxu0 0.0
      %529 = vmatprep.subr.mxu0 0.0
      %530 = vmatpush2.msra.mxu0 0.0
      %531 = vmatprep.subr.mxu0 0.0
      %532 = vmatpush2.msra.mxu0 0.0
      %533 = vmatprep.subr.mxu0 0.0
      %534 = vmatpush2.msra.mxu0 0.0
      %535 = vmatprep.subr.mxu0 0.0
      %536 = vmatpush2.msra.mxu0 0.0
      %537 = vmatprep.subr.mxu0 0.0
      %538 = vmatpush2.msra.mxu0 0.0
      %539 = vmatprep.subr.mxu0 0.0
      %540 = vmatpush2.msra.mxu0 0.0
      %541 = vmatprep.subr.mxu0 0.0
      %542 = vmatpush2.msra.mxu0 0.0
      %543 = vmatprep.subr.mxu0 0.0
      %544 = vmatpush2.msra.mxu0 0.0
      %545 = vmatprep.mubr.f32.mxu0 0.0
      %546 = vmatmul.mubr.f32.gmra.mxu0 %v480
      %v547 = vpop.f32.mrf.mxu0
      %v548 = vadd.f32 %v380, %v547
      %v549 = vpop.f32.mrf.mxu0
      %550 = vdwg.mxu0
      %v551 = vtanh.pop %v548
      %552 = vmatprep.subr.mxu0 0.0
      %553 = vmatpush1.msra.mxu0 %v408
      %554 = vmatprep.subr.mxu0 0.0
      %555 = vmatpush1.msra.mxu0 %v407
      %556 = vmatprep.subr.mxu0 0.0
      %557 = vmatpush1.msra.mxu0 %v406
      %558 = vmatprep.subr.mxu0 0.0
      %559 = vmatpush1.msra.mxu0 %v405
      %560 = vmatprep.subr.mxu0 0.0
      %561 = vmatpush1.msra.mxu0 %v404
      %562 = vmatprep.subr.mxu0 0.0
      %563 = vmatpush1.msra.mxu0 %v403
      %564 = vmatprep.subr.mxu0 0.0
      %565 = vmatpush1.msra.mxu0 %v402
      %566 = vmatprep.subr.mxu0 0.0
      %567 = vmatpush1.msra.mxu0 %v401
      %568 = vmatprep.subr.mxu0 0.0
      %569 = vmatpush1.msra.mxu0 %v400
      %570 = vmatprep.subr.mxu0 0.0
      %571 = vmatpush1.msra.mxu0 %v399
      %572 = vmatprep.subr.mxu0 0.0
      %573 = vmatpush1.msra.mxu0 %v398
      %574 = vmatprep.subr.mxu0 0.0
      %575 = vmatpush1.msra.mxu0 %v397
      %576 = vmatprep.subr.mxu0 0.0
      %577 = vmatpush1.msra.mxu0 %v396
      %578 = vmatprep.subr.mxu0 0.0
      %579 = vmatpush1.msra.mxu0 %v395
      %580 = vmatprep.subr.mxu0 0.0
      %581 = vmatpush1.msra.mxu0 %v394
      %582 = vmatprep.subr.mxu0 0.0
      %583 = vmatpush1.msra.mxu0 %v393
      %584 = vmatprep.subr.mxu0 0.0
      %585 = vmatpush2.msra.mxu0 0.0
      %586 = vmatprep.subr.mxu0 0.0
      %587 = vmatpush2.msra.mxu0 0.0
      %588 = vmatprep.subr.mxu0 0.0
      %589 = vmatpush2.msra.mxu0 0.0
      %590 = vmatprep.subr.mxu0 0.0
      %591 = vmatpush2.msra.mxu0 0.0
      %592 = vmatprep.subr.mxu0 0.0
      %593 = vmatpush2.msra.mxu0 0.0
      %594 = vmatprep.subr.mxu0 0.0
      %595 = vmatpush2.msra.mxu0 0.0
      %596 = vmatprep.subr.mxu0 0.0
      %597 = vmatpush2.msra.mxu0 0.0
      %598 = vmatprep.subr.mxu0 0.0
      %599 = vmatpush2.msra.mxu0 0.0
      %600 = vmatprep.subr.mxu0 0.0
      %601 = vmatpush2.msra.mxu0 0.0
      %602 = vmatprep.subr.mxu0 0.0
      %603 = vmatpush2.msra.mxu0 0.0
      %604 = vmatprep.subr.mxu0 0.0
      %605 = vmatpush2.msra.mxu0 0.0
      %606 = vmatprep.subr.mxu0 0.0
      %607 = vmatpush2.msra.mxu0 0.0
      %608 = vmatprep.subr.mxu0 0.0
      %609 = vmatpush2.msra.mxu0 0.0
      %610 = vmatprep.subr.mxu0 0.0
      %611 = vmatpush2.msra.mxu0 0.0
      %612 = vmatprep.subr.mxu0 0.0
      %613 = vmatpush2.msra.mxu0 0.0
      %614 = vmatprep.subr.mxu0 0.0
      %615 = vmatpush2.msra.mxu0 0.0
      %616 = vmatprep.mubr.f32.mxu0 0.0
      %617 = vmatmul.mubr.f32.gmra.mxu0 %v551
      %v618 = vpop.f32.mrf.mxu0
      %v619 = vadd.f32 %v385, %v618
      %v620 = vpop.f32.mrf.mxu0
      %621 = vdwg.mxu0
      %v622 = vtanh.pop %v619
      %623 = vmatprep.subr.mxu0 0.0
      %624 = vmatpush1.msra.mxu0 %v408
      %625 = vmatprep.subr.mxu0 0.0
      %626 = vmatpush1.msra.mxu0 %v407
      %627 = vmatprep.subr.mxu0 0.0
      %628 = vmatpush1.msra.mxu0 %v406
      %629 = vmatprep.subr.mxu0 0.0
      %630 = vmatpush1.msra.mxu0 %v405
      %631 = vmatprep.subr.mxu0 0.0
      %632 = vmatpush1.msra.mxu0 %v404
      %633 = vmatprep.subr.mxu0 0.0
      %634 = vmatpush1.msra.mxu0 %v403
      %635 = vmatprep.subr.mxu0 0.0
      %636 = vmatpush1.msra.mxu0 %v402
      %637 = vmatprep.subr.mxu0 0.0
      %638 = vmatpush1.msra.mxu0 %v401
      %639 = vmatprep.subr.mxu0 0.0
      %640 = vmatpush1.msra.mxu0 %v400
      %641 = vmatprep.subr.mxu0 0.0
      %642 = vmatpush1.msra.mxu0 %v399
      %643 = vmatprep.subr.mxu0 0.0
      %644 = vmatpush1.msra.mxu0 %v398
      %645 = vmatprep.subr.mxu0 0.0
      %646 = vmatpush1.msra.mxu0 %v397
      %647 = vmatprep.subr.mxu0 0.0
      %648 = vmatpush1.msra.mxu0 %v396
      %649 = vmatprep.subr.mxu0 0.0
      %650 = vmatpush1.msra.mxu0 %v395
      %651 = vmatprep.subr.mxu0 0.0
      %652 = vmatpush1.msra.mxu0 %v394
      %653 = vmatprep.subr.mxu0 0.0
      %654 = vmatpush1.msra.mxu0 %v393
      %655 = vmatprep.subr.mxu0 0.0
      %656 = vmatpush2.msra.mxu0 0.0
      %657 = vmatprep.subr.mxu0 0.0
      %658 = vmatpush2.msra.mxu0 0.0
      %659 = vmatprep.subr.mxu0 0.0
      %660 = vmatpush2.msra.mxu0 0.0
      %661 = vmatprep.subr.mxu0 0.0
      %662 = vmatpush2.msra.mxu0 0.0
      %663 = vmatprep.subr.mxu0 0.0
      %664 = vmatpush2.msra.mxu0 0.0
      %665 = vmatprep.subr.mxu0 0.0
      %666 = vmatpush2.msra.mxu0 0.0
      %667 = vmatprep.subr.mxu0 0.0
      %668 = vmatpush2.msra.mxu0 0.0
      %669 = vmatprep.subr.mxu0 0.0
      %670 = vmatpush2.msra.mxu0 0.0
      %671 = vmatprep.subr.mxu0 0.0
      %672 = vmatpush2.msra.mxu0 0.0
      %673 = vmatprep.subr.mxu0 0.0
      %674 = vmatpush2.msra.mxu0 0.0
      %675 = vmatprep.subr.mxu0 0.0
      %676 = vmatpush2.msra.mxu0 0.0
      %677 = vmatprep.subr.mxu0 0.0
      %678 = vmatpush2.msra.mxu0 0.0
      %679 = vmatprep.subr.mxu0 0.0
      %680 = vmatpush2.msra.mxu0 0.0
      %681 = vmatprep.subr.mxu0 0.0
      %682 = vmatpush2.msra.mxu0 0.0
      %683 = vmatprep.subr.mxu0 0.0
      %684 = vmatpush2.msra.mxu0 0.0
      %685 = vmatprep.subr.mxu0 0.0
      %686 = vmatpush2.msra.mxu0 0.0
      %687 = vmatprep.mubr.f32.mxu0 0.0
      %688 = vmatmul.mubr.f32.gmra.mxu0 %v622
      %v689 = vpop.f32.mrf.mxu0
      %v690 = vadd.f32 %v390, %v689
      %v691 = vpop.f32.mrf.mxu0
      %692 = vdwg.mxu0
      %v693 = vtanh.pop %v690
      %694 = vst [vmem:[#allocation2] sm:$0xff] %v693
      %p695 = scmp.eq.s32.totalorder %s23, 1
      // Predicated region
      $region49: #{_lambda_.1} parent=43 // pred_check
        %p696 = pneg %p695
      $region50: #{_lambda_.1} parent=43 // pred_check_branch
        %698 = sbr.rel (%p696) target = $region52
      $region51: #{_lambda_.1} parent=43 // pred_region
        %v699 = vld [vmem:[%s4] sm:$0x1]
        %v701 = vlaneseq
        %v702 = vshrl.u32 %v701, 7
        %v703 = vsub.s32 0, %v702
        %v704 = vrot.slane %v699, %v703
        %v706 = vmul.f32 %v693, %v704
        %707 = vadd.xlane.f32.xlu0 %v706
        %v708 = vpop.xlane.xlu0 %707
        %s709 = sld [smem:[#allocation3]]
        %v710 = vstv %s709
        %v711 = vadd.f32 %v708, %v710
        %vm712 = vcmask 7168
        %713 = vst.msk [vmem:[%s275] sm:$0xff] %vm712, %v711
      $region52: #{_lambda_.1} parent=43 // pred_fallthru
        _
      %p714 = scmp.lt.s32.totalorder %s22, 0
      %s715 = scalar_select %p714, %s22, 0
      %s716 = smul.addr %s715, 8
      %s717 = scalar_lea.vmem %s6, %s716
      // Predicated region
      $region53: #{_lambda_.1} parent=43 // pred_check
        %p718 = pneg %p181
      $region54: #{_lambda_.1} parent=43 // pred_check_branch
        %720 = sbr.rel (%p718) target = $region56
      $region55: #{_lambda_.1} parent=43 // pred_region
        _
      $region56: #{_lambda_.1} parent=43 // pred_fallthru
        _
      // Predicated region
      $region57: #{_lambda_.1} parent=43 // pred_check
        %p721 = pneg %p181
      $region58: #{_lambda_.1} parent=43 // pred_check_branch
        %723 = sbr.rel (%p721) target = $region60
      $region59: #{_lambda_.1} parent=43 // pred_region
        %p724 = scmp.lt.s32.totalorder %s22, 0
        %s725 = scalar_select %p724, %s22, 0
        %s726 = smul.addr %s725, 8
        %s727 = scalar_lea.vmem %s6, %s726
      $region60: #{_lambda_.1} parent=43 // pred_fallthru
        _
    $region44: #{_lambda_.1} parent=5 // pred_fallthru
      _
    %p728 = scmp.le.s32.totalorder 2, %s13
    // Predicated region
    $region61: #{_lambda_.1} parent=5 // pred_check
      %p729 = pneg %p728
    $region62: #{_lambda_.1} parent=5 // pred_check_branch
      %731 = sbr.rel (%p729) target = $region64
    $region63: #{_lambda_.1} parent=5 // pred_region
      %s732 = ssub.s32 %s13, 2
    $region64: #{_lambda_.1} parent=5 // pred_fallthru
      _
  $region6: #{_lambda_.1} parent=0 // loop_footer
    %s17 = sadd.s32 1, %s13
  $region7: #{_lambda_.1} parent=0 // loop_footer_branch
    %12 = sbr.rel target = $region3
  $region8: #{_lambda_.1} parent=0 // loop_exit
    _

</llo_original>
